<compile_context>
chip_gen: v7x
topology: tpu7x:2x2x1
jax: 0.10.0
libtpu: 0.0.40
codegen_flags: <defaults>
</compile_context>

<pallas_src>
import jax
import jax.numpy as jnp
from jax.experimental import pallas as pl
from jax.experimental.pallas import tpu as pltpu


def _se_gate_kernel(gate_ref, x_ref, o_ref):
    """out = sigmoid(gate) * x.  gate_ref is (TM, 1), x_ref/o_ref are (TM, HW)."""
    g = jax.nn.sigmoid(gate_ref[...].astype(jnp.float32))        # tiny, EUP
    o_ref[...] = (g * x_ref[...].astype(jnp.float32)).astype(o_ref.dtype)


def _round_up(x, m):
    return ((x + m - 1) // m) * m


def _sublane_align(dtype):
    """Rows per packed sublane group: 8 (f32), 16 (bf16), 32 (int8/fp8)."""
    return max(8, 32 // jnp.dtype(dtype).itemsize)


def _pick_tile(rows, padded_row_bytes, target_bytes, row_align,
               ensure_two_steps=False):
    """Largest row tile (multiple of row_align) whose padded block fits budget."""
    tm = target_bytes // max(padded_row_bytes, 1)
    tm = max((tm // row_align) * row_align, row_align)
    if ensure_two_steps and rows > row_align:
        half = _round_up(-(-rows // 2), row_align)   # ceil(rows/2), aligned
        tm = min(tm, half)
    if tm >= rows:
        return rows                                  # full extent: always legal
    return tm


_GEN_CONFIG = {
    # target_block_bytes, vmem_limit_bytes, split rows so both cores get work
    "v5e": dict(target_block_bytes=2 << 20, vmem_limit_bytes=None,
                split_for_cores=False),
    "v6e": dict(target_block_bytes=5 << 20, vmem_limit_bytes=64 << 20,
                split_for_cores=False),
    "v7x": dict(target_block_bytes=4 << 20, vmem_limit_bytes=48 << 20,
                split_for_cores=True),
}
_DEFAULT_CONFIG = dict(target_block_bytes=2 << 20, vmem_limit_bytes=None,
                       split_for_cores=False)


def _gen_config():
    try:
        kind = jax.devices()[0].device_kind.lower()
    except Exception:
        return _DEFAULT_CONFIG
    if "v5 lite" in kind or "v5e" in kind or "v5litepod" in kind:
        return _GEN_CONFIG["v5e"]
    if "v6" in kind:
        return _GEN_CONFIG["v6e"]
    if "v7" in kind:
        return _GEN_CONFIG["v7x"]
    return _DEFAULT_CONFIG


def sigmoid_mul(x115, x111, *, target_block_bytes=None, vmem_limit_bytes=None,
                donate_x=False, force_pallas=False,
                small_fast_path_bytes=1 << 20):
    """x115: (N, C, 1, 1) gate logits; x111: (N, C, H, W) feature map.

    Returns sigmoid(x115) * x111 with the same shape/dtype as x111.
    """
    N, C, H, W = x111.shape
    assert x115.shape == (N, C, 1, 1)
    NC, HW = N * C, H * W
    itemsize = jnp.dtype(x111.dtype).itemsize
    gate_itemsize = jnp.dtype(x115.dtype).itemsize

    # Small-tensor fast path: the op is launch-overhead bound below ~1 MiB;
    # let XLA fuse the elementwise math instead of paying a custom-call.
    if not force_pallas and NC * HW * itemsize < small_fast_path_bytes:
        return (jax.nn.sigmoid(x115.astype(jnp.float32)) *
                x111.astype(jnp.float32)).astype(x111.dtype)

    cfg = _gen_config()
    if target_block_bytes is None:
        target_block_bytes = cfg["target_block_bytes"]
    if vmem_limit_bytes is None:
        vmem_limit_bytes = cfg["vmem_limit_bytes"]

    # Row-major layout (zero-copy reshapes): (n, c) rows on the sublane axis,
    # full-extent H*W on the lane axis; (TM, 1) gate broadcasts over lanes.
    x_2d = x111.reshape(NC, HW)
    g_2d = x115.reshape(NC, 1)

    # Budget with the VMEM (lane-padded) footprint, not the raw bytes.
    padded_row_bytes = _round_up(HW, 128) * itemsize
    row_align = _sublane_align(x111.dtype)
    tm = _pick_tile(NC, padded_row_bytes, target_block_bytes, row_align,
                    ensure_two_steps=cfg["split_for_cores"])

    # Optional aliasing of the feature map into the output (only meaningful
    # when the caller donates x111 at its own jit boundary).
    io_alias = {1: 0} if donate_x else {}

    cost = pl.CostEstimate(
        flops=NC * HW,
        transcendentals=NC,
        bytes_accessed=2 * NC * HW * itemsize + NC * gate_itemsize,
    )

    out_2d = pl.pallas_call(
        _se_gate_kernel,
        out_shape=jax.ShapeDtypeStruct((NC, HW), x111.dtype),
        grid=(pl.cdiv(NC, tm),),
        in_specs=[
            pl.BlockSpec((tm, 1), lambda i: (i, 0)),
            pl.BlockSpec((tm, HW), lambda i: (i, 0)),
        ],
        out_specs=pl.BlockSpec((tm, HW), lambda i: (i, 0)),
        compiler_params=pltpu.CompilerParams(
            dimension_semantics=("parallel",),   # shard row grid over TCs (v7x)
            vmem_limit_bytes=vmem_limit_bytes,
        ),
        cost_estimate=cost,
        input_output_aliases=io_alias,
    )(g_2d, x_2d)
    return out_2d.reshape(N, C, H, W)


if __name__ == "__main__":
    key = jax.random.PRNGKey(0)
    k1, k2, k3, k4 = jax.random.split(key, 4)

    # Module's shapes: x111 (1,208,14,14), x115 (1,208,1,1).
    x111 = jax.random.normal(k1, (1, 208, 14, 14), dtype=jnp.float32)
    x115 = jax.random.normal(k2, (1, 208, 1, 1), dtype=jnp.float32)
    ref = jax.nn.sigmoid(x115) * x111

    # 1) Default path at the demo shape -> small-tensor fast path (XLA fusion).
    out_fast = jax.block_until_ready(sigmoid_mul(x115, x111))
    assert out_fast.shape == (1, 208, 14, 14)
    assert jnp.allclose(out_fast, ref, atol=1e-6, rtol=1e-6)

    # 2) Force the Pallas kernel at the demo shape (row-major path).
    out = jax.block_until_ready(sigmoid_mul(x115, x111, force_pallas=True))
    assert jnp.allclose(out, ref, atol=1e-6, rtol=1e-6)

    # 3) Force a multi-step grid (small block budget -> partial last block) to
    #    exercise the pipelined/gridded path with masked edge stores.
    out_g = jax.block_until_ready(
        sigmoid_mul(x115, x111, force_pallas=True,
                    target_block_bytes=64 * 1024))
    assert jnp.allclose(out_g, ref, atol=1e-6, rtol=1e-6)

    # 4) bf16 feature map (sublane alignment 16) with a gridded row axis.
    xb = jax.random.normal(k3, (2, 64, 14, 14), dtype=jnp.bfloat16)
    gb = jax.random.normal(k4, (2, 64, 1, 1), dtype=jnp.bfloat16)
    out_b = jax.block_until_ready(
        sigmoid_mul(gb, xb, force_pallas=True, target_block_bytes=32 * 1024))
    ref_b = (jax.nn.sigmoid(gb.astype(jnp.float32)) *
             xb.astype(jnp.float32)).astype(jnp.bfloat16)
    assert jnp.allclose(out_b.astype(jnp.float32), ref_b.astype(jnp.float32),
                        atol=2e-2, rtol=2e-2)

    print("KERNEL_OK")
</pallas_src>

<mosaic_0001>
module attributes {stable_mosaic.version = 11 : i64} {
  func.func @_se_gate_kernel(%arg0: i32, %arg1: memref<208x1xf32, #tpu.memory_space<vmem>>, %arg2: memref<208x196xf32, #tpu.memory_space<vmem>>, %arg3: memref<208x196xf32, #tpu.memory_space<vmem>>) attributes {dimension_semantics = [#tpu.dimension_semantics<parallel>], iteration_bounds = array<i64: 1>, scalar_prefetch = 0 : i64, scratch_operands = 0 : i64, tpu.core_type = #tpu.core_type<tc>, window_params = [{transform_indices = @transform_0, window_bounds = array<i64: 208, 1>}, {transform_indices = @transform_1, window_bounds = array<i64: 208, 196>}, {transform_indices = @transform_2, window_bounds = array<i64: 208, 196>}]} {
    %c0 = arith.constant 0 : index
    %c0_0 = arith.constant 0 : index
    %0 = vector.load %arg1[%c0, %c0_0] : memref<208x1xf32, #tpu.memory_space<vmem>>, vector<208x1xf32>
    %1 = arith.negf %0 : vector<208x1xf32>
    %2 = math.exp %1 : vector<208x1xf32>
    %cst = arith.constant 1.000000e+00 : f32
    %3 = vector.broadcast %cst : f32 to vector<208x1xf32>
    %4 = arith.addf %3, %2 : vector<208x1xf32>
    %5 = arith.divf %3, %4 : vector<208x1xf32>
    %c0_1 = arith.constant 0 : index
    %c0_2 = arith.constant 0 : index
    %6 = vector.load %arg2[%c0_1, %c0_2] : memref<208x196xf32, #tpu.memory_space<vmem>>, vector<208x196xf32>
    %7 = vector.broadcast %5 : vector<208x1xf32> to vector<208x196xf32>
    %8 = arith.mulf %7, %6 : vector<208x196xf32>
    %c0_3 = arith.constant 0 : index
    %c0_4 = arith.constant 0 : index
    %9 = vector.load %arg3[%c0_3, %c0_4] : memref<208x196xf32, #tpu.memory_space<vmem>>, vector<208x196xf32>
    tpu.vector_store %arg3[%c0_3, %c0_4], %8 {strides = array<i32>} : memref<208x196xf32, #tpu.memory_space<vmem>>, vector<208x196xf32>,
    return
  }
  func.func @transform_0(%arg0: i32) -> (i32, i32) {
    %c0_i32 = arith.constant 0 : i32
    %c0_i32_0 = arith.constant 0 : i32
    return %arg0, %c0_i32 : i32, i32
  }
  func.func @transform_1(%arg0: i32) -> (i32, i32) {
    %c0_i32 = arith.constant 0 : i32
    %c0_i32_0 = arith.constant 0 : i32
    return %arg0, %c0_i32 : i32, i32
  }
  func.func @transform_2(%arg0: i32) -> (i32, i32) {
    %c0_i32 = arith.constant 0 : i32
    %c0_i32_0 = arith.constant 0 : i32
    return %arg0, %c0_i32 : i32, i32
  }
}

</mosaic_0001>

<llo_original>
// kernel: tpu_custom_call.1
$region0: #{tpu_custom_call.1}
  #allocation0 [shape = 'u32[]', space=smem, size = 0x4, offset = 0x4, fixed_abs, tag = 'smem constant byte address 0x4 - core index']
  #allocation1 [shape = 'u32[144,128]{1,0:T(1,128)}', space=vmem, size = 0x12000, scoped, tag = 'internal scratch']
  %s0 = inlined_call_operand.vmem [shape: f32[208,1], index: 0, kind: input, shape index: {}]
  %s1 = inlined_call_operand.vmem [shape: f32[208,196], index: 1, kind: input, shape index: {}]
  %s2 = inlined_call_operand.vmem [shape: f32[208,196], index: 2, kind: output, shape index: {}]
  %s3 = sld [smem:[#allocation0]]
  $region18: #{tpu_custom_call.1} parent=0
    _
  %s5 = ssub.s32 1, %s3
  %s6 = scalar_select 0, %s5, %s3
  // Predicated region
  $region2: #{tpu_custom_call.1} parent=0 // pred_check
    _
  $region3: #{tpu_custom_call.1} parent=0 // pred_check_branch
    %8 = sbr.rel (0) target = $region5
  $region4: #{tpu_custom_call.1} parent=0 // pred_region
    _
  $region5: #{tpu_custom_call.1} parent=0 // pred_fallthru
    _
  // Predicated region
  $region6: #{tpu_custom_call.1} parent=0 // pred_check
    _
  $region7: #{tpu_custom_call.1} parent=0 // pred_check_branch
    %10 = sbr.rel (0) target = $region9
  $region8: #{tpu_custom_call.1} parent=0 // pred_region
    _
  $region9: #{tpu_custom_call.1} parent=0 // pred_fallthru
    _
  %v11 = vld [vmem:[%s0] sm:$0xff]
  %v12 = vld [vmem:[%s0 + $0x8] sm:$0xff]
  %v13 = vld [vmem:[%s0 + $0x10] sm:$0xff]
  %v14 = vld [vmem:[%s0 + $0x18] sm:$0xff]
  %v15 = vld [vmem:[%s0 + $0x20] sm:$0xff]
  %v16 = vld [vmem:[%s0 + $0x28] sm:$0xff]
  %v17 = vld [vmem:[%s0 + $0x30] sm:$0xff]
  %v18 = vld [vmem:[%s0 + $0x38] sm:$0xff]
  %v19 = vld [vmem:[%s0 + $0x40] sm:$0xff]
  %v20 = vld [vmem:[%s0 + $0x48] sm:$0xff]
  %v21 = vld [vmem:[%s0 + $0x50] sm:$0xff]
  %v22 = vld [vmem:[%s0 + $0x58] sm:$0xff]
  %v23 = vld [vmem:[%s0 + $0x60] sm:$0xff]
  %v24 = vld [vmem:[%s0 + $0x68] sm:$0xff]
  %v25 = vld [vmem:[%s0 + $0x70] sm:$0xff]
  %v26 = vld [vmem:[%s0 + $0x78] sm:$0xff]
  %v27 = vld [vmem:[%s0 + $0x80] sm:$0xff]
  %v28 = vld [vmem:[%s0 + $0x88] sm:$0xff]
  %v29 = vld [vmem:[%s0 + $0x90] sm:$0xff]
  %v30 = vld [vmem:[%s0 + $0x98] sm:$0xff]
  %v31 = vld [vmem:[%s0 + $0xa0] sm:$0xff]
  %v32 = vld [vmem:[%s0 + $0xa8] sm:$0xff]
  %v33 = vld [vmem:[%s0 + $0xb0] sm:$0xff]
  %v34 = vld [vmem:[%s0 + $0xb8] sm:$0xff]
  %v35 = vld [vmem:[%s0 + $0xc0] sm:$0xff]
  %v36 = vld [vmem:[%s0 + $0xc8] sm:$0xff]
  %v37 = vxor.u32 %v11, 2147483648
  %v38 = vxor.u32 %v12, 2147483648
  %v39 = vxor.u32 %v13, 2147483648
  %v40 = vxor.u32 %v14, 2147483648
  %v41 = vxor.u32 %v15, 2147483648
  %v42 = vxor.u32 %v16, 2147483648
  %v43 = vxor.u32 %v17, 2147483648
  %v44 = vxor.u32 %v18, 2147483648
  %v45 = vxor.u32 %v19, 2147483648
  %v46 = vxor.u32 %v20, 2147483648
  %v47 = vxor.u32 %v21, 2147483648
  %v48 = vxor.u32 %v22, 2147483648
  %v49 = vxor.u32 %v23, 2147483648
  %v50 = vxor.u32 %v24, 2147483648
  %v51 = vxor.u32 %v25, 2147483648
  %v52 = vxor.u32 %v26, 2147483648
  %v53 = vxor.u32 %v27, 2147483648
  %v54 = vxor.u32 %v28, 2147483648
  %v55 = vxor.u32 %v29, 2147483648
  %v56 = vxor.u32 %v30, 2147483648
  %v57 = vxor.u32 %v31, 2147483648
  %v58 = vxor.u32 %v32, 2147483648
  %v59 = vxor.u32 %v33, 2147483648
  %v60 = vxor.u32 %v34, 2147483648
  %v61 = vxor.u32 %v35, 2147483648
  %v62 = vxor.u32 %v36, 2147483648
  %v63 = vmul.f32 %v37, 1.442695
  %v64 = vpow.pop %v63
  %v65 = vmul.f32 %v38, 1.442695
  %v66 = vpow.pop %v65
  %v67 = vmul.f32 %v39, 1.442695
  %v68 = vpow.pop %v67
  %v69 = vmul.f32 %v40, 1.442695
  %v70 = vpow.pop %v69
  %v71 = vmul.f32 %v41, 1.442695
  %v72 = vpow.pop %v71
  %v73 = vmul.f32 %v42, 1.442695
  %v74 = vpow.pop %v73
  %v75 = vmul.f32 %v43, 1.442695
  %v76 = vpow.pop %v75
  %v77 = vmul.f32 %v44, 1.442695
  %v78 = vpow.pop %v77
  %v79 = vmul.f32 %v45, 1.442695
  %v80 = vpow.pop %v79
  %v81 = vmul.f32 %v46, 1.442695
  %v82 = vpow.pop %v81
  %v83 = vmul.f32 %v47, 1.442695
  %v84 = vpow.pop %v83
  %v85 = vmul.f32 %v48, 1.442695
  %v86 = vpow.pop %v85
  %v87 = vmul.f32 %v49, 1.442695
  %v88 = vpow.pop %v87
  %v89 = vmul.f32 %v50, 1.442695
  %v90 = vpow.pop %v89
  %v91 = vmul.f32 %v51, 1.442695
  %v92 = vpow.pop %v91
  %v93 = vmul.f32 %v52, 1.442695
  %v94 = vpow.pop %v93
  %v95 = vmul.f32 %v53, 1.442695
  %v96 = vpow.pop %v95
  %v97 = vmul.f32 %v54, 1.442695
  %v98 = vpow.pop %v97
  %v99 = vmul.f32 %v55, 1.442695
  %v100 = vpow.pop %v99
  %v101 = vmul.f32 %v56, 1.442695
  %v102 = vpow.pop %v101
  %v103 = vmul.f32 %v57, 1.442695
  %v104 = vpow.pop %v103
  %v105 = vmul.f32 %v58, 1.442695
  %v106 = vpow.pop %v105
  %v107 = vmul.f32 %v59, 1.442695
  %v108 = vpow.pop %v107
  %v109 = vmul.f32 %v60, 1.442695
  %v110 = vpow.pop %v109
  %v111 = vmul.f32 %v61, 1.442695
  %v112 = vpow.pop %v111
  %v113 = vmul.f32 %v62, 1.442695
  %v114 = vpow.pop %v113
  %v115 = vadd.f32 %v64, 1.0
  %v116 = vadd.f32 %v66, 1.0
  %v117 = vadd.f32 %v68, 1.0
  %v118 = vadd.f32 %v70, 1.0
  %v119 = vadd.f32 %v72, 1.0
  %v120 = vadd.f32 %v74, 1.0
  %v121 = vadd.f32 %v76, 1.0
  %v122 = vadd.f32 %v78, 1.0
  %v123 = vadd.f32 %v80, 1.0
  %v124 = vadd.f32 %v82, 1.0
  %v125 = vadd.f32 %v84, 1.0
  %v126 = vadd.f32 %v86, 1.0
  %v127 = vadd.f32 %v88, 1.0
  %v128 = vadd.f32 %v90, 1.0
  %v129 = vadd.f32 %v92, 1.0
  %v130 = vadd.f32 %v94, 1.0
  %v131 = vadd.f32 %v96, 1.0
  %v132 = vadd.f32 %v98, 1.0
  %v133 = vadd.f32 %v100, 1.0
  %v134 = vadd.f32 %v102, 1.0
  %v135 = vadd.f32 %v104, 1.0
  %v136 = vadd.f32 %v106, 1.0
  %v137 = vadd.f32 %v108, 1.0
  %v138 = vadd.f32 %v110, 1.0
  %v139 = vadd.f32 %v112, 1.0
  %v140 = vadd.f32 %v114, 1.0
  %v141 = vrcp.pop %v115
  %v142 = vmul.f32 1.0, %v141
  %v143 = vrcp.pop %v116
  %v144 = vmul.f32 1.0, %v143
  %v145 = vrcp.pop %v117
  %v146 = vmul.f32 1.0, %v145
  %v147 = vrcp.pop %v118
  %v148 = vmul.f32 1.0, %v147
  %v149 = vrcp.pop %v119
  %v150 = vmul.f32 1.0, %v149
  %v151 = vrcp.pop %v120
  %v152 = vmul.f32 1.0, %v151
  %v153 = vrcp.pop %v121
  %v154 = vmul.f32 1.0, %v153
  %v155 = vrcp.pop %v122
  %v156 = vmul.f32 1.0, %v155
  %v157 = vrcp.pop %v123
  %v158 = vmul.f32 1.0, %v157
  %v159 = vrcp.pop %v124
  %v160 = vmul.f32 1.0, %v159
  %v161 = vrcp.pop %v125
  %v162 = vmul.f32 1.0, %v161
  %v163 = vrcp.pop %v126
  %v164 = vmul.f32 1.0, %v163
  %v165 = vrcp.pop %v127
  %v166 = vmul.f32 1.0, %v165
  %v167 = vrcp.pop %v128
  %v168 = vmul.f32 1.0, %v167
  %v169 = vrcp.pop %v129
  %v170 = vmul.f32 1.0, %v169
  %v171 = vrcp.pop %v130
  %v172 = vmul.f32 1.0, %v171
  %v173 = vrcp.pop %v131
  %v174 = vmul.f32 1.0, %v173
  %v175 = vrcp.pop %v132
  %v176 = vmul.f32 1.0, %v175
  %v177 = vrcp.pop %v133
  %v178 = vmul.f32 1.0, %v177
  %v179 = vrcp.pop %v134
  %v180 = vmul.f32 1.0, %v179
  %v181 = vrcp.pop %v135
  %v182 = vmul.f32 1.0, %v181
  %v183 = vrcp.pop %v136
  %v184 = vmul.f32 1.0, %v183
  %v185 = vrcp.pop %v137
  %v186 = vmul.f32 1.0, %v185
  %v187 = vrcp.pop %v138
  %v188 = vmul.f32 1.0, %v187
  %v189 = vrcp.pop %v139
  %v190 = vmul.f32 1.0, %v189
  %v191 = vrcp.pop %v140
  %v192 = vmul.f32 1.0, %v191
  %v193 = vld [vmem:[%s1] sm:$0xff]
  %v194 = vld [vmem:[%s1 + $0x8] sm:$0xff]
  %v195 = vld [vmem:[%s1 + $0x10] sm:$0xff]
  %v196 = vld [vmem:[%s1 + $0x18] sm:$0xff]
  %v197 = vld [vmem:[%s1 + $0x20] sm:$0xff]
  %v198 = vld [vmem:[%s1 + $0x28] sm:$0xff]
  %v199 = vld [vmem:[%s1 + $0x30] sm:$0xff]
  %v200 = vld [vmem:[%s1 + $0x38] sm:$0xff]
  %v201 = vld [vmem:[%s1 + $0x40] sm:$0xff]
  %v202 = vld [vmem:[%s1 + $0x48] sm:$0xff]
  %v203 = vld [vmem:[%s1 + $0x50] sm:$0xff]
  %v204 = vld [vmem:[%s1 + $0x58] sm:$0xff]
  %v205 = vld [vmem:[%s1 + $0x60] sm:$0xff]
  %v206 = vld [vmem:[%s1 + $0x68] sm:$0xff]
  %v207 = vld [vmem:[%s1 + $0x70] sm:$0xff]
  %v208 = vld [vmem:[%s1 + $0x78] sm:$0xff]
  %v209 = vld [vmem:[%s1 + $0x80] sm:$0xff]
  %v210 = vld [vmem:[%s1 + $0x88] sm:$0xff]
  %v211 = vld [vmem:[%s1 + $0x90] sm:$0xff]
  %v212 = vld [vmem:[%s1 + $0x98] sm:$0xff]
  %v213 = vld [vmem:[%s1 + $0xa0] sm:$0xff]
  %v214 = vld [vmem:[%s1 + $0xa8] sm:$0xff]
  %v215 = vld [vmem:[%s1 + $0xb0] sm:$0xff]
  %v216 = vld [vmem:[%s1 + $0xb8] sm:$0xff]
  %v217 = vld [vmem:[%s1 + $0xc0] sm:$0xff]
  %v218 = vld [vmem:[%s1 + $0xc8] sm:$0xff]
  %v219 = vld [vmem:[%s1 + $0xd0] sm:$0xff]
  %v220 = vld [vmem:[%s1 + $0xd8] sm:$0xff]
  %v221 = vld [vmem:[%s1 + $0xe0] sm:$0xff]
  %v222 = vld [vmem:[%s1 + $0xe8] sm:$0xff]
  %v223 = vld [vmem:[%s1 + $0xf0] sm:$0xff]
  %v224 = vld [vmem:[%s1 + $0xf8] sm:$0xff]
  %v225 = vld [vmem:[%s1 + $0x100] sm:$0xff]
  %v226 = vld [vmem:[%s1 + $0x108] sm:$0xff]
  %v227 = vld [vmem:[%s1 + $0x110] sm:$0xff]
  %v228 = vld [vmem:[%s1 + $0x118] sm:$0xff]
  %v229 = vld [vmem:[%s1 + $0x120] sm:$0xff]
  %v230 = vld [vmem:[%s1 + $0x128] sm:$0xff]
  %v231 = vld [vmem:[%s1 + $0x130] sm:$0xff]
  %v232 = vld [vmem:[%s1 + $0x138] sm:$0xff]
  %v233 = vld [vmem:[%s1 + $0x140] sm:$0xff]
  %v234 = vld [vmem:[%s1 + $0x148] sm:$0xff]
  %v235 = vld [vmem:[%s1 + $0x150] sm:$0xff]
  %v236 = vld [vmem:[%s1 + $0x158] sm:$0xff]
  %v237 = vld [vmem:[%s1 + $0x160] sm:$0xff]
  %v238 = vld [vmem:[%s1 + $0x168] sm:$0xff]
  %v239 = vld [vmem:[%s1 + $0x170] sm:$0xff]
  %v240 = vld [vmem:[%s1 + $0x178] sm:$0xff]
  %v241 = vld [vmem:[%s1 + $0x180] sm:$0xff]
  %v242 = vld [vmem:[%s1 + $0x188] sm:$0xff]
  %v243 = vld [vmem:[%s1 + $0x190] sm:$0xff]
  %v244 = vld [vmem:[%s1 + $0x198] sm:$0xff]
  %246 = vset.pattern.permute.xlu0 0
  %247 = vperm.xlu0 %246, %v142
  %v248 = vpop.permute.xlu0 %247
  %251 = vset.pattern.permute.xlu0 0
  %252 = vperm.xlu0 %251, %v144
  %v253 = vpop.permute.xlu0 %252
  %256 = vset.pattern.permute.xlu0 0
  %257 = vperm.xlu0 %256, %v146
  %v258 = vpop.permute.xlu0 %257
  %261 = vset.pattern.permute.xlu0 0
  %262 = vperm.xlu0 %261, %v148
  %v263 = vpop.permute.xlu0 %262
  %266 = vset.pattern.permute.xlu0 0
  %267 = vperm.xlu0 %266, %v150
  %v268 = vpop.permute.xlu0 %267
  %271 = vset.pattern.permute.xlu0 0
  %272 = vperm.xlu0 %271, %v152
  %v273 = vpop.permute.xlu0 %272
  %276 = vset.pattern.permute.xlu0 0
  %277 = vperm.xlu0 %276, %v154
  %v278 = vpop.permute.xlu0 %277
  %281 = vset.pattern.permute.xlu0 0
  %282 = vperm.xlu0 %281, %v156
  %v283 = vpop.permute.xlu0 %282
  %286 = vset.pattern.permute.xlu0 0
  %287 = vperm.xlu0 %286, %v158
  %v288 = vpop.permute.xlu0 %287
  %291 = vset.pattern.permute.xlu0 0
  %292 = vperm.xlu0 %291, %v160
  %v293 = vpop.permute.xlu0 %292
  %296 = vset.pattern.permute.xlu0 0
  %297 = vperm.xlu0 %296, %v162
  %v298 = vpop.permute.xlu0 %297
  %301 = vset.pattern.permute.xlu0 0
  %302 = vperm.xlu0 %301, %v164
  %v303 = vpop.permute.xlu0 %302
  %306 = vset.pattern.permute.xlu0 0
  %307 = vperm.xlu0 %306, %v166
  %v308 = vpop.permute.xlu0 %307
  %311 = vset.pattern.permute.xlu0 0
  %312 = vperm.xlu0 %311, %v168
  %v313 = vpop.permute.xlu0 %312
  %316 = vset.pattern.permute.xlu0 0
  %317 = vperm.xlu0 %316, %v170
  %v318 = vpop.permute.xlu0 %317
  %321 = vset.pattern.permute.xlu0 0
  %322 = vperm.xlu0 %321, %v172
  %v323 = vpop.permute.xlu0 %322
  %326 = vset.pattern.permute.xlu0 0
  %327 = vperm.xlu0 %326, %v174
  %v328 = vpop.permute.xlu0 %327
  %331 = vset.pattern.permute.xlu0 0
  %332 = vperm.xlu0 %331, %v176
  %v333 = vpop.permute.xlu0 %332
  %336 = vset.pattern.permute.xlu0 0
  %337 = vperm.xlu0 %336, %v178
  %v338 = vpop.permute.xlu0 %337
  %341 = vset.pattern.permute.xlu0 0
  %342 = vperm.xlu0 %341, %v180
  %v343 = vpop.permute.xlu0 %342
  %346 = vset.pattern.permute.xlu0 0
  %347 = vperm.xlu0 %346, %v182
  %v348 = vpop.permute.xlu0 %347
  %351 = vset.pattern.permute.xlu0 0
  %352 = vperm.xlu0 %351, %v184
  %v353 = vpop.permute.xlu0 %352
  %356 = vset.pattern.permute.xlu0 0
  %357 = vperm.xlu0 %356, %v186
  %v358 = vpop.permute.xlu0 %357
  %361 = vset.pattern.permute.xlu0 0
  %362 = vperm.xlu0 %361, %v188
  %v363 = vpop.permute.xlu0 %362
  %366 = vset.pattern.permute.xlu0 0
  %367 = vperm.xlu0 %366, %v190
  %v368 = vpop.permute.xlu0 %367
  %371 = vset.pattern.permute.xlu0 0
  %372 = vperm.xlu0 %371, %v192
  %v373 = vpop.permute.xlu0 %372
  %v375 = vmul.f32 %v248, %v193
  %v376 = vmul.f32 %v248, %v194
  %v377 = vmul.f32 %v253, %v195
  %v378 = vmul.f32 %v253, %v196
  %v379 = vmul.f32 %v258, %v197
  %v380 = vmul.f32 %v258, %v198
  %v381 = vmul.f32 %v263, %v199
  %v382 = vmul.f32 %v263, %v200
  %v383 = vmul.f32 %v268, %v201
  %v384 = vmul.f32 %v268, %v202
  %v385 = vmul.f32 %v273, %v203
  %v386 = vmul.f32 %v273, %v204
  %v387 = vmul.f32 %v278, %v205
  %v388 = vmul.f32 %v278, %v206
  %v389 = vmul.f32 %v283, %v207
  %v390 = vmul.f32 %v283, %v208
  %v391 = vmul.f32 %v288, %v209
  %v392 = vmul.f32 %v288, %v210
  %v393 = vmul.f32 %v293, %v211
  %v394 = vmul.f32 %v293, %v212
  %v395 = vmul.f32 %v298, %v213
  %v396 = vmul.f32 %v298, %v214
  %v397 = vmul.f32 %v303, %v215
  %v398 = vmul.f32 %v303, %v216
  %v399 = vmul.f32 %v308, %v217
  %v400 = vmul.f32 %v308, %v218
  %v401 = vmul.f32 %v313, %v219
  %v402 = vmul.f32 %v313, %v220
  %v403 = vmul.f32 %v318, %v221
  %v404 = vmul.f32 %v318, %v222
  %v405 = vmul.f32 %v323, %v223
  %v406 = vmul.f32 %v323, %v224
  %v407 = vmul.f32 %v328, %v225
  %v408 = vmul.f32 %v328, %v226
  %v409 = vmul.f32 %v333, %v227
  %v410 = vmul.f32 %v333, %v228
  %v411 = vmul.f32 %v338, %v229
  %v412 = vmul.f32 %v338, %v230
  %v413 = vmul.f32 %v343, %v231
  %v414 = vmul.f32 %v343, %v232
  %v415 = vmul.f32 %v348, %v233
  %v416 = vmul.f32 %v348, %v234
  %v417 = vmul.f32 %v353, %v235
  %v418 = vmul.f32 %v353, %v236
  %v419 = vmul.f32 %v358, %v237
  %v420 = vmul.f32 %v358, %v238
  %v421 = vmul.f32 %v363, %v239
  %v422 = vmul.f32 %v363, %v240
  %v423 = vmul.f32 %v368, %v241
  %v424 = vmul.f32 %v368, %v242
  %v425 = vmul.f32 %v373, %v243
  %v426 = vmul.f32 %v373, %v244
  %427 = vst [vmem:[%s2] sm:$0xff] %v375
  %vm428 = vcmask 556032
  %429 = vst.msk [vmem:[%s2 + $0x8] sm:$0xff] %vm428, %v376
  %430 = vst [vmem:[%s2 + $0x10] sm:$0xff] %v377
  %431 = vst.msk [vmem:[%s2 + $0x18] sm:$0xff] %vm428, %v378
  %432 = vst [vmem:[%s2 + $0x20] sm:$0xff] %v379
  %433 = vst.msk [vmem:[%s2 + $0x28] sm:$0xff] %vm428, %v380
  %434 = vst [vmem:[%s2 + $0x30] sm:$0xff] %v381
  %435 = vst.msk [vmem:[%s2 + $0x38] sm:$0xff] %vm428, %v382
  %436 = vst [vmem:[%s2 + $0x40] sm:$0xff] %v383
  %437 = vst.msk [vmem:[%s2 + $0x48] sm:$0xff] %vm428, %v384
  %438 = vst [vmem:[%s2 + $0x50] sm:$0xff] %v385
  %439 = vst.msk [vmem:[%s2 + $0x58] sm:$0xff] %vm428, %v386
  %440 = vst [vmem:[%s2 + $0x60] sm:$0xff] %v387
  %441 = vst.msk [vmem:[%s2 + $0x68] sm:$0xff] %vm428, %v388
  %442 = vst [vmem:[%s2 + $0x70] sm:$0xff] %v389
  %443 = vst.msk [vmem:[%s2 + $0x78] sm:$0xff] %vm428, %v390
  %444 = vst [vmem:[%s2 + $0x80] sm:$0xff] %v391
  %445 = vst.msk [vmem:[%s2 + $0x88] sm:$0xff] %vm428, %v392
  %446 = vst [vmem:[%s2 + $0x90] sm:$0xff] %v393
  %447 = vst.msk [vmem:[%s2 + $0x98] sm:$0xff] %vm428, %v394
  %448 = vst [vmem:[%s2 + $0xa0] sm:$0xff] %v395
  %449 = vst.msk [vmem:[%s2 + $0xa8] sm:$0xff] %vm428, %v396
  %450 = vst [vmem:[%s2 + $0xb0] sm:$0xff] %v397
  %451 = vst.msk [vmem:[%s2 + $0xb8] sm:$0xff] %vm428, %v398
  %452 = vst [vmem:[%s2 + $0xc0] sm:$0xff] %v399
  %453 = vst.msk [vmem:[%s2 + $0xc8] sm:$0xff] %vm428, %v400
  %454 = vst [vmem:[%s2 + $0xd0] sm:$0xff] %v401
  %455 = vst.msk [vmem:[%s2 + $0xd8] sm:$0xff] %vm428, %v402
  %456 = vst [vmem:[%s2 + $0xe0] sm:$0xff] %v403
  %457 = vst.msk [vmem:[%s2 + $0xe8] sm:$0xff] %vm428, %v404
  %458 = vst [vmem:[%s2 + $0xf0] sm:$0xff] %v405
  %459 = vst.msk [vmem:[%s2 + $0xf8] sm:$0xff] %vm428, %v406
  %460 = vst [vmem:[%s2 + $0x100] sm:$0xff] %v407
  %461 = vst.msk [vmem:[%s2 + $0x108] sm:$0xff] %vm428, %v408
  %462 = vst [vmem:[%s2 + $0x110] sm:$0xff] %v409
  %463 = vst.msk [vmem:[%s2 + $0x118] sm:$0xff] %vm428, %v410
  %464 = vst [vmem:[%s2 + $0x120] sm:$0xff] %v411
  %465 = vst.msk [vmem:[%s2 + $0x128] sm:$0xff] %vm428, %v412
  %466 = vst [vmem:[%s2 + $0x130] sm:$0xff] %v413
  %467 = vst.msk [vmem:[%s2 + $0x138] sm:$0xff] %vm428, %v414
  %468 = vst [vmem:[%s2 + $0x140] sm:$0xff] %v415
  %469 = vst.msk [vmem:[%s2 + $0x148] sm:$0xff] %vm428, %v416
  %470 = vst [vmem:[%s2 + $0x150] sm:$0xff] %v417
  %471 = vst.msk [vmem:[%s2 + $0x158] sm:$0xff] %vm428, %v418
  %472 = vst [vmem:[%s2 + $0x160] sm:$0xff] %v419
  %473 = vst.msk [vmem:[%s2 + $0x168] sm:$0xff] %vm428, %v420
  %474 = vst [vmem:[%s2 + $0x170] sm:$0xff] %v421
  %475 = vst.msk [vmem:[%s2 + $0x178] sm:$0xff] %vm428, %v422
  %476 = vst [vmem:[%s2 + $0x180] sm:$0xff] %v423
  %477 = vst.msk [vmem:[%s2 + $0x188] sm:$0xff] %vm428, %v424
  %478 = vst [vmem:[%s2 + $0x190] sm:$0xff] %v425
  %479 = vst.msk [vmem:[%s2 + $0x198] sm:$0xff] %vm428, %v426
  // Predicated region
  $region10: #{tpu_custom_call.1} parent=0 // pred_check
    _
  $region11: #{tpu_custom_call.1} parent=0 // pred_check_branch
    %481 = sbr.rel (0) target = $region13
  $region12: #{tpu_custom_call.1} parent=0 // pred_region
    _
  $region13: #{tpu_custom_call.1} parent=0 // pred_fallthru
    _
  // Predicated region
  $region14: #{tpu_custom_call.1} parent=0 // pred_check
    _
  $region15: #{tpu_custom_call.1} parent=0 // pred_check_branch
    %483 = sbr.rel (0) target = $region17
  $region16: #{tpu_custom_call.1} parent=0 // pred_region
    _
  $region17: #{tpu_custom_call.1} parent=0 // pred_fallthru
    _

</llo_original>
